<compile_context>
chip_gen: v6e
topology: v6e:2x2x1
jax: 0.10.0
libtpu: 0.0.40
codegen_flags: <defaults>
</compile_context>

<pallas_src>
import jax
import jax.numpy as jnp
from jax import lax
from jax.experimental import pallas as pl
from jax.experimental.pallas import tpu as pltpu

EPS = 1e-5          # BatchNorm2d default eps
NEG_SLOPE = 0.01    # LeakyReLU default negative_slope
LANE = 128


def _round_up(x, m):
    return (x + m - 1) // m * m


# ---------- Pass 1: conv matmul (MXU, f32 acc) + per-tile BN partial sums ----------

def _conv_stats_kernel(p_ref, w_ref, y_ref, stats_ref):
    # p_ref: (tile_m, K) bf16      w_ref: (K, C_pad) bf16 (same block every step)
    # y_ref: (tile_m, C_pad) bf16  stats_ref: (1, 8, C_pad) f32 per-tile partials
    y = jnp.dot(p_ref[...], w_ref[...], preferred_element_type=jnp.float32)
    y_ref[...] = y.astype(y_ref.dtype)            # bf16 writeback (halves HBM traffic)
    s = jnp.sum(y, axis=0, keepdims=True)         # (1, C_pad), from the f32 value
    sq = jnp.sum(y * y, axis=0, keepdims=True)    # (1, C_pad)
    pad = jnp.zeros((6, s.shape[1]), jnp.float32)
    stats_ref[0] = jnp.concatenate([s, sq, pad], axis=0)   # rows 0=sum, 1=sumsq


# ---------- Pass 2: fused BatchNorm affine + LeakyReLU (pure HBM streaming) ----------

def _bn_act_kernel(y_ref, scale_ref, shift_ref, o_ref):
    z = y_ref[...].astype(jnp.float32) * scale_ref[...] + shift_ref[...]
    o_ref[...] = jnp.where(z > 0, z, NEG_SLOPE * z)


def conv_block(x_nchw, weight, bias, gamma, beta, *,
               tile_m_max=2048, tile_m2_max=4096):
    """ConvBlock.forward (training-mode BatchNorm).
    x_nchw: (N, Cin, H, W), weight: (Cout, Cin, 3, 3), bias/gamma/beta: (Cout,).
    Returns (N, Cout, Ho, Wo), float32."""
    del bias  # Conv bias is exactly cancelled by the BatchNorm mean subtraction.

    N, Cin, H, W = x_nchw.shape
    Cout = weight.shape[0]
    Ho = (H - 1) // 2 + 1
    Wo = (W - 1) // 2 + 1
    M = N * Ho * Wo
    K = 9 * Cin                      # contraction axis: left UNPADDED in HBM
    C_pad = _round_up(Cout, LANE)    # lane-dense output-channel axis

    # ---- device-aware VMEM ceiling (128 MiB on v5e/v6e, 64 MiB on v7x) ----
    try:
        info = pltpu.get_tpu_info()
        vmem_cap = int(getattr(info, "vmem_capacity_bytes", 64 * 2**20))
    except Exception:
        vmem_cap = 64 * 2**20
    vmem_ceiling = min((vmem_cap * 3) // 4, 100 * 2**20)   # headroom for Mosaic scratch

    # ---- pass-1 tile: biggest multiple of 128 that fits the double-buffered footprint ----
    fixed1 = 2 * K * C_pad * 2 + 2 * 8 * C_pad * 4                 # weights + stats blocks
    per_row1 = 2 * K * 2 + 2 * C_pad * 2 + 2 * C_pad * 4           # patches + y(bf16) + f32 temps
    tile_m = _round_up(min(max(tile_m_max, LANE), max(M, LANE)), LANE)
    while tile_m > LANE and fixed1 + tile_m * per_row1 > vmem_ceiling:
        tile_m = _round_up(max(tile_m // 2, LANE), LANE)

    # ---- pass-2 tile: larger streaming tile, kept a multiple of tile_m ----
    per_row2 = 2 * C_pad * 2 + 2 * C_pad * 4                       # y in (bf16) + out (f32)
    k2 = max(1, min(max(tile_m2_max, LANE), _round_up(M, LANE)) // tile_m)
    while k2 > 1 and (k2 * tile_m) * per_row2 + (2 * C_pad * 4) > vmem_ceiling:
        k2 //= 2
    tile_m2 = k2 * tile_m

    M_pad = _round_up(M, tile_m2)
    grid1 = M_pad // tile_m
    grid2 = M_pad // tile_m2

    vmem1 = int(min(vmem_ceiling, max(32 * 2**20, fixed1 + tile_m * per_row1 + (4 << 20))))
    vmem2 = int(min(vmem_ceiling, max(32 * 2**20, tile_m2 * per_row2 + (4 << 20))))

    # ---- glue: NCHW -> NHWC, spatial zero pad, im2col ordered (kh, kw, cin), bf16 ----
    # TODO(synk): replace with in-kernel row-band patch building to avoid this HBM inflation.
    x = jnp.transpose(x_nchw, (0, 2, 3, 1)).astype(jnp.float32)
    xp = jnp.pad(x, ((0, 0), (1, 1), (1, 1), (0, 0)))
    taps = [xp[:, kh:kh + 2 * Ho:2, kw:kw + 2 * Wo:2, :]
            for kh in range(3) for kw in range(3)]
    patches = jnp.concatenate(taps, axis=-1).reshape(M, K)
    patches = jnp.pad(patches, ((0, M_pad - M), (0, 0))).astype(jnp.bfloat16)

    # (Cout, Cin, 3, 3) -> (3, 3, Cin, Cout) -> (K, Cout) -> pad Cout only, bf16
    w2d = jnp.transpose(weight, (2, 3, 1, 0)).reshape(K, Cout)
    w2d = jnp.pad(w2d, ((0, 0), (0, C_pad - Cout))).astype(jnp.bfloat16)

    gamma_p = jnp.pad(gamma.astype(jnp.float32), (0, C_pad - Cout)).reshape(1, C_pad)
    beta_p = jnp.pad(beta.astype(jnp.float32), (0, C_pad - Cout)).reshape(1, C_pad)

    # ---- pass 1: conv (bf16 x bf16 -> f32 acc) + per-tile sum / sumsq partials ----
    cost1 = pl.CostEstimate(
        flops=2 * M_pad * K * C_pad,
        transcendentals=0,
        bytes_accessed=(M_pad * K * 2 + K * C_pad * 2
                        + M_pad * C_pad * 2 + grid1 * 8 * C_pad * 4))

    y, stats = pl.pallas_call(
        _conv_stats_kernel,
        grid=(grid1,),
        in_specs=[
            pl.BlockSpec((tile_m, K), lambda i: (i, 0)),
            pl.BlockSpec((K, C_pad), lambda i: (0, 0)),
        ],
        out_specs=[
            pl.BlockSpec((tile_m, C_pad), lambda i: (i, 0)),
            pl.BlockSpec((1, 8, C_pad), lambda i: (i, 0, 0)),
        ],
        out_shape=[
            jax.ShapeDtypeStruct((M_pad, C_pad), jnp.bfloat16),
            jax.ShapeDtypeStruct((grid1, 8, C_pad), jnp.float32),
        ],
        compiler_params=pltpu.CompilerParams(
            dimension_semantics=("parallel",),     # per-tile partials -> both TCs on v7x
            vmem_limit_bytes=vmem1),
        cost_estimate=cost1,
    )(patches, w2d)

    # ---- tiny per-channel BN finalize in plain JAX (full-M biased batch stats, f32) ----
    inv_m = jnp.float32(1.0 / M)                   # padded rows are exact zeros -> no bias
    mean = jnp.sum(stats[:, 0, :], axis=0, keepdims=True) * inv_m       # (1, C_pad)
    ex2 = jnp.sum(stats[:, 1, :], axis=0, keepdims=True) * inv_m
    var = jnp.maximum(ex2 - mean * mean, 0.0)
    scale = gamma_p * lax.rsqrt(var + EPS)
    shift = beta_p - mean * scale

    # ---- pass 2: fused BN affine + LeakyReLU (independent tiles -> "parallel") ----
    cost2 = pl.CostEstimate(
        flops=4 * M_pad * C_pad,
        transcendentals=0,
        bytes_accessed=M_pad * C_pad * 2 + M_pad * C_pad * 4 + 4 * C_pad * 4)

    out = pl.pallas_call(
        _bn_act_kernel,
        grid=(grid2,),
        in_specs=[
            pl.BlockSpec((tile_m2, C_pad), lambda i: (i, 0)),
            pl.BlockSpec((1, C_pad), lambda i: (0, 0)),
            pl.BlockSpec((1, C_pad), lambda i: (0, 0)),
        ],
        out_specs=pl.BlockSpec((tile_m2, C_pad), lambda i: (i, 0)),
        out_shape=jax.ShapeDtypeStruct((M_pad, C_pad), jnp.float32),
        compiler_params=pltpu.CompilerParams(
            dimension_semantics=("parallel",),
            vmem_limit_bytes=vmem2),
        cost_estimate=cost2,
    )(y, scale, shift)

    out = out[:M, :Cout].reshape(N, Ho, Wo, Cout)
    # TODO(synk): fuse this NCHW conversion into pass 2 (write (C, tile_m) blocks after an
    # in-kernel transpose) to save the extra output round trip through HBM.
    return jnp.transpose(out, (0, 3, 1, 2))


def conv_block_reference(x, weight, bias, gamma, beta):
    """Pure-JAX reference matching PyTorch ConvBlock.forward (training mode)."""
    y = lax.conv_general_dilated(
        x, weight, window_strides=(2, 2), padding=((1, 1), (1, 1)),
        dimension_numbers=("NCHW", "OIHW", "NCHW"))
    y = y + bias.reshape(1, -1, 1, 1)
    mean = jnp.mean(y, axis=(0, 2, 3), keepdims=True)
    var = jnp.mean((y - mean) ** 2, axis=(0, 2, 3), keepdims=True)
    y_hat = (y - mean) / jnp.sqrt(var + EPS)
    z = y_hat * gamma.reshape(1, -1, 1, 1) + beta.reshape(1, -1, 1, 1)
    return jnp.where(z > 0, z, NEG_SLOPE * z)


if __name__ == "__main__":
    # Small shapes consistent with ConvBlock: batch=2, in_channel=4, spatial=16, out_channel=8
    N, Cin, H, W, Cout = 2, 4, 16, 16, 8

    key = jax.random.PRNGKey(0)
    kx, kw, kb = jax.random.split(key, 3)
    x = jax.random.normal(kx, (N, Cin, H, W), dtype=jnp.float32)
    weight = 0.1 * jax.random.normal(kw, (Cout, Cin, 3, 3), dtype=jnp.float32)
    bias = 0.1 * jax.random.normal(kb, (Cout,), dtype=jnp.float32)
    gamma = jnp.ones((Cout,), dtype=jnp.float32)   # BatchNorm2d default affine init
    beta = jnp.zeros((Cout,), dtype=jnp.float32)

    out = jax.block_until_ready(conv_block(x, weight, bias, gamma, beta))
    ref = jax.block_until_ready(conv_block_reference(x, weight, bias, gamma, beta))

    assert out.shape == (N, Cout, H // 2, W // 2), out.shape
    # bf16 MXU operands + bf16 intermediate y (f32 accumulation / f32 BN math)
    # -> loosened tolerance vs the f32 reference.
    err = float(jnp.max(jnp.abs(out - ref)))
    assert jnp.allclose(out, ref, atol=5e-2, rtol=5e-2), err
    print("KERNEL_OK")
</pallas_src>

<mosaic_0001>
module attributes {stable_mosaic.version = 11 : i64} {
  func.func @_conv_stats_kernel(%arg0: i32, %arg1: memref<128x36xbf16, #tpu.memory_space<vmem>>, %arg2: memref<36x128xbf16, #tpu.memory_space<vmem>>, %arg3: memref<128x128xbf16, #tpu.memory_space<vmem>>, %arg4: memref<1x8x128xf32, #tpu.memory_space<vmem>>) attributes {dimension_semantics = [#tpu.dimension_semantics<parallel>], iteration_bounds = array<i64: 1>, scalar_prefetch = 0 : i64, scratch_operands = 0 : i64, tpu.core_type = #tpu.core_type<tc>, window_params = [{transform_indices = @transform_0, window_bounds = array<i64: 128, 36>}, {pipeline_mode = #tpu.pipeline_mode<synchronous>, transform_indices = @transform_1, window_bounds = array<i64: 36, 128>}, {transform_indices = @transform_2, window_bounds = array<i64: 128, 128>}, {transform_indices = @transform_3, window_bounds = array<i64: 1, 8, 128>}]} {
    %c0 = arith.constant 0 : index
    %c0_0 = arith.constant 0 : index
    %0 = vector.load %arg1[%c0, %c0_0] : memref<128x36xbf16, #tpu.memory_space<vmem>>, vector<128x36xbf16>
    %c0_1 = arith.constant 0 : index
    %c0_2 = arith.constant 0 : index
    %1 = vector.load %arg2[%c0_1, %c0_2] : memref<36x128xbf16, #tpu.memory_space<vmem>>, vector<36x128xbf16>
    %cst = arith.constant dense<0.000000e+00> : vector<128x128xf32>
    %2 = tpu.matmul %0, %1, %cst {dimension_numbers = #tpu.dot_dimension_numbers<[1], [0], [0], [1], [0, 0, 1, 1], [], []>} : vector<128x36xbf16>, vector<36x128xbf16>, vector<128x128xf32> -> vector<128x128xf32>
    %3 = arith.truncf %2 : vector<128x128xf32> to vector<128x128xbf16>
    %c0_3 = arith.constant 0 : index
    %c0_4 = arith.constant 0 : index
    %4 = vector.load %arg3[%c0_3, %c0_4] : memref<128x128xbf16, #tpu.memory_space<vmem>>, vector<128x128xbf16>
    tpu.vector_store %arg3[%c0_3, %c0_4], %3 {strides = array<i32>} : memref<128x128xbf16, #tpu.memory_space<vmem>>, vector<128x128xbf16>,
    %cst_5 = arith.constant dense<0.000000e+00> : vector<128xf32>
    %5 = vector.multi_reduction <add>, %2, %cst_5 [0] : vector<128x128xf32> to vector<128xf32>
    %6 = vector.shape_cast %5 : vector<128xf32> to vector<1x128xf32>
    %7 = arith.mulf %2, %2 : vector<128x128xf32>
    %cst_6 = arith.constant dense<0.000000e+00> : vector<128xf32>
    %8 = vector.multi_reduction <add>, %7, %cst_6 [0] : vector<128x128xf32> to vector<128xf32>
    %9 = vector.shape_cast %8 : vector<128xf32> to vector<1x128xf32>
    %cst_7 = arith.constant 0.000000e+00 : f32
    %10 = vector.broadcast %cst_7 : f32 to vector<6x128xf32>
    %11 = tpu.concatenate %6, %9, %10 in 0 : vector<1x128xf32>, vector<1x128xf32>, vector<6x128xf32> -> vector<8x128xf32>
    %c0_8 = arith.constant 0 : index
    %c0_9 = arith.constant 0 : index
    %c0_10 = arith.constant 0 : index
    %12 = vector.load %arg4[%c0_8, %c0_9, %c0_10] : memref<1x8x128xf32, #tpu.memory_space<vmem>>, vector<1x8x128xf32>
    %13 = vector.shape_cast %12 : vector<1x8x128xf32> to vector<8x128xf32>
    %14 = vector.shape_cast %11 : vector<8x128xf32> to vector<1x8x128xf32>
    tpu.vector_store %arg4[%c0_8, %c0_9, %c0_10], %14 {strides = array<i32>} : memref<1x8x128xf32, #tpu.memory_space<vmem>>, vector<1x8x128xf32>,
    return
  }
  func.func @transform_0(%arg0: i32) -> (i32, i32) {
    %c0_i32 = arith.constant 0 : i32
    %c0_i32_0 = arith.constant 0 : i32
    return %arg0, %c0_i32 : i32, i32
  }
  func.func @transform_1(%arg0: i32) -> (i32, i32) {
    %c0_i32 = arith.constant 0 : i32
    %c0_i32_0 = arith.constant 0 : i32
    %c0_i32_1 = arith.constant 0 : i32
    return %c0_i32, %c0_i32_0 : i32, i32
  }
  func.func @transform_2(%arg0: i32) -> (i32, i32) {
    %c0_i32 = arith.constant 0 : i32
    %c0_i32_0 = arith.constant 0 : i32
    return %arg0, %c0_i32 : i32, i32
  }
  func.func @transform_3(%arg0: i32) -> (i32, i32, i32) {
    %c0_i32 = arith.constant 0 : i32
    %c0_i32_0 = arith.constant 0 : i32
    %c0_i32_1 = arith.constant 0 : i32
    return %arg0, %c0_i32, %c0_i32_0 : i32, i32, i32
  }
}

</mosaic_0001>

<llo_original>
// kernel: tpu_custom_call.1
$region0: #{tpu_custom_call.1}
  #allocation0 [shape = 'u32[]', space=smem, size = 0x4, offset = 0x4, fixed_abs, tag = 'smem constant byte address 0x4 - core index']
  #allocation1 [shape = 'u32[144,128]{1,0:T(1,128)}', space=vmem, size = 0x12000, scoped, tag = 'internal scratch']
  %s0 = inlined_call_operand.vmem [shape: bf16[128,36], index: 0, kind: input, shape index: {}]
  %s1 = inlined_call_operand.vmem [shape: bf16[36,128], index: 1, kind: input, shape index: {}]
  %s2 = inlined_call_operand.hbm [shape: bf16[128,128], index: 2, kind: output, shape index: {0}]
  %s3 = inlined_call_operand.hbm [shape: f32[1,8,128], index: 3, kind: output, shape index: {1}]
  %4 = xla_tuple %s2, %s3
  %s5 = sld [smem:[#allocation0]]
  $region26: #{tpu_custom_call.1} parent=0
    _
  %s7 = ssub.s32 1, %s5
  %s8 = scalar_select 0, %s7, %s5
  $region1: #{tpu_custom_call.1} parent=0
    #allocation2 [shape = 'u8[32768]{0}', space=vmem, size = 0x8000, scoped, tag = 'output window, operand 0, single buffered']
    #allocation3 [shape = 's32[1]{0}', space=sflag, size = 0x4, scoped, tag = 'scoped memory for tpu_custom_call.1']
    #allocation4 [shape = 'u8[4096]{0}', space=vmem, size = 0x1000, scoped, tag = 'output window, operand 1, single buffered']
    #allocation5 [shape = 's32[1]{0}', space=sflag, size = 0x4, scoped, tag = 'scoped memory for tpu_custom_call.1']
    %9 = vsyncpa [#allocation3], 0
    %10 = vsyncpa [#allocation5], 0
    // Predicated region
    $region2: #{tpu_custom_call.1} parent=1 // pred_check
      _
    $region3: #{tpu_custom_call.1} parent=1 // pred_check_branch
      %12 = sbr.rel (0) target = $region5
    $region4: #{tpu_custom_call.1} parent=1 // pred_region
      _
    $region5: #{tpu_custom_call.1} parent=1 // pred_fallthru
      _
    // Predicated region
    $region6: #{tpu_custom_call.1} parent=1 // pred_check
      _
    $region7: #{tpu_custom_call.1} parent=1 // pred_check_branch
      %14 = sbr.rel (0) target = $region9
    $region8: #{tpu_custom_call.1} parent=1 // pred_region
      _
    $region9: #{tpu_custom_call.1} parent=1 // pred_fallthru
      _
    %v16 = vld [vmem:[%s0] sm:$0xf]
    %v17 = vld [vmem:[%s0 + $0x4] sm:$0xf]
    %v18 = vld [vmem:[%s0 + $0x8] sm:$0xf]
    %v19 = vld [vmem:[%s0 + $0xc] sm:$0xf]
    %v20 = vld [vmem:[%s0 + $0x10] sm:$0xf]
    %v21 = vld [vmem:[%s0 + $0x14] sm:$0xf]
    %v22 = vld [vmem:[%s0 + $0x18] sm:$0xf]
    %v23 = vld [vmem:[%s0 + $0x1c] sm:$0xf]
    %v24 = vld [vmem:[%s0 + $0x20] sm:$0xf]
    %v25 = vld [vmem:[%s0 + $0x24] sm:$0xf]
    %v26 = vld [vmem:[%s0 + $0x28] sm:$0xf]
    %v27 = vld [vmem:[%s0 + $0x2c] sm:$0xf]
    %v28 = vld [vmem:[%s0 + $0x30] sm:$0xf]
    %v29 = vld [vmem:[%s0 + $0x34] sm:$0xf]
    %v30 = vld [vmem:[%s0 + $0x38] sm:$0xf]
    %v31 = vld [vmem:[%s0 + $0x3c] sm:$0xf]
    %v32 = vld [vmem:[%s1] sm:$0xf]
    %v33 = vld [vmem:[%s1 + $0x4] sm:$0xf]
    %v34 = vld [vmem:[%s1 + $0x8] sm:$0xf]
    %v35 = vld [vmem:[%s1 + $0xc] sm:$0xf]
    %v36 = vld [vmem:[%s1 + $0x10] sm:$0x3]
    %v53 = vunpack.c.l.b16 %v16
    %v54 = vunpack.c.l.b16 %v17
    %v55 = vunpack.c.l.b16 %v18
    %v56 = vunpack.c.l.b16 %v19
    %v57 = vunpack.c.l.b16 %v20
    %v58 = vunpack.c.l.b16 %v21
    %v59 = vunpack.c.l.b16 %v22
    %v60 = vunpack.c.l.b16 %v23
    %v61 = vunpack.c.l.b16 %v24
    %v62 = vunpack.c.l.b16 %v25
    %v63 = vunpack.c.l.b16 %v26
    %v64 = vunpack.c.l.b16 %v27
    %v65 = vunpack.c.l.b16 %v28
    %v66 = vunpack.c.l.b16 %v29
    %v67 = vunpack.c.l.b16 %v30
    %v68 = vunpack.c.l.b16 %v31
    %v69 = vpack.c.b16 %v54, %v53
    %v70 = vpack.c.b16 %v56, %v55
    %v71 = vpack.c.b16 %v58, %v57
    %v72 = vpack.c.b16 %v60, %v59
    %v73 = vpack.c.b16 %v62, %v61
    %v74 = vpack.c.b16 %v64, %v63
    %v75 = vpack.c.b16 %v66, %v65
    %v76 = vpack.c.b16 %v68, %v67
    %v82 = vunpack.c.l.b16 %v32
    %v83 = vunpack.c.l.b16 %v33
    %v84 = vunpack.c.l.b16 %v34
    %v85 = vunpack.c.l.b16 %v35
    %v86 = vunpack.c.l.b16 %v36
    %v87 = vpack.c.b16 %v83, %v82
    %v88 = vpack.c.b16 %v85, %v84
    %v89 = vpack.c.b16 %v86, %v86
    %vm92 = vcmask 293888
    %v94 = vsel %vm92, %v69, 0
    %v97 = vsel %vm92, %v70, 0
    %v100 = vsel %vm92, %v71, 0
    %v103 = vsel %vm92, %v72, 0
    %v106 = vsel %vm92, %v73, 0
    %v109 = vsel %vm92, %v74, 0
    %v112 = vsel %vm92, %v75, 0
    %v115 = vsel %vm92, %v76, 0
    %vm117 = vcmask 1041408
    %v119 = vsel %vm117, %v89, 0
    %121 = vmatprep.subr.bf16.mxu0 0
    %122 = vmatpush1.bf16.msra.mxu0 0
    %123 = vmatprep.subr.bf16.mxu0 0
    %124 = vmatpush1.bf16.msra.mxu0 0
    %125 = vmatprep.subr.bf16.mxu0 0
    %126 = vmatpush1.bf16.msra.mxu0 0
    %127 = vmatprep.subr.bf16.mxu0 0
    %128 = vmatpush1.bf16.msra.mxu0 0
    %129 = vmatprep.subr.bf16.mxu0 0
    %130 = vmatpush1.bf16.msra.mxu0 0
    %131 = vmatprep.subr.bf16.mxu0 0
    %132 = vmatpush1.bf16.msra.mxu0 %v119
    %133 = vmatprep.subr.bf16.mxu0 0
    %134 = vmatpush1.bf16.msra.mxu0 %v88
    %135 = vmatprep.subr.bf16.mxu0 0
    %136 = vmatpush1.bf16.msra.mxu0 %v87
    %137 = vmatprep.subr.bf16.mxu0 0
    %138 = vmatpush2.bf16.msra.mxu0 0
    %139 = vmatprep.subr.bf16.mxu0 0
    %140 = vmatpush2.bf16.msra.mxu0 0
    %141 = vmatprep.subr.bf16.mxu0 0
    %142 = vmatpush2.bf16.msra.mxu0 0
    %143 = vmatprep.subr.bf16.mxu0 0
    %144 = vmatpush2.bf16.msra.mxu0 0
    %145 = vmatprep.subr.bf16.mxu0 0
    %146 = vmatpush2.bf16.msra.mxu0 0
    %147 = vmatprep.subr.bf16.mxu0 0
    %148 = vmatpush2.bf16.msra.mxu0 0
    %149 = vmatprep.subr.bf16.mxu0 0
    %150 = vmatpush2.bf16.msra.mxu0 0
    %151 = vmatprep.subr.bf16.mxu0 0
    %152 = vmatpush2.bf16.msra.mxu0 0
    %153 = vmatprep.mubr.bf16.mxu0 0
    %154 = vmatmul.mubr.bf16.gmra.mxu0 %v94
    %v155 = vpop.f32.mrf.mxu0
    %v156 = vadd.f32 0.0, %v155
    %v157 = vpop.f32.mrf.mxu0
    %v158 = vpop.f32.mrf.mxu0
    %v159 = vadd.f32 0.0, %v158
    %v160 = vpop.f32.mrf.mxu0
    %161 = vmatprep.mubr.bf16.mxu0 0
    %162 = vmatmul.mubr.bf16.gmra.mxu0 %v97
    %v163 = vpop.f32.mrf.mxu0
    %v164 = vadd.f32 0.0, %v163
    %v165 = vpop.f32.mrf.mxu0
    %v166 = vpop.f32.mrf.mxu0
    %v167 = vadd.f32 0.0, %v166
    %v168 = vpop.f32.mrf.mxu0
    %169 = vmatprep.mubr.bf16.mxu0 0
    %170 = vmatmul.mubr.bf16.gmra.mxu0 %v100
    %v171 = vpop.f32.mrf.mxu0
    %v172 = vadd.f32 0.0, %v171
    %v173 = vpop.f32.mrf.mxu0
    %v174 = vpop.f32.mrf.mxu0
    %v175 = vadd.f32 0.0, %v174
    %v176 = vpop.f32.mrf.mxu0
    %177 = vmatprep.mubr.bf16.mxu0 0
    %178 = vmatmul.mubr.bf16.gmra.mxu0 %v103
    %v179 = vpop.f32.mrf.mxu0
    %v180 = vadd.f32 0.0, %v179
    %v181 = vpop.f32.mrf.mxu0
    %v182 = vpop.f32.mrf.mxu0
    %v183 = vadd.f32 0.0, %v182
    %v184 = vpop.f32.mrf.mxu0
    %185 = vmatprep.mubr.bf16.mxu0 0
    %186 = vmatmul.mubr.bf16.gmra.mxu0 %v106
    %v187 = vpop.f32.mrf.mxu0
    %v188 = vadd.f32 0.0, %v187
    %v189 = vpop.f32.mrf.mxu0
    %v190 = vpop.f32.mrf.mxu0
    %v191 = vadd.f32 0.0, %v190
    %v192 = vpop.f32.mrf.mxu0
    %193 = vmatprep.mubr.bf16.mxu0 0
    %194 = vmatmul.mubr.bf16.gmra.mxu0 %v109
    %v195 = vpop.f32.mrf.mxu0
    %v196 = vadd.f32 0.0, %v195
    %v197 = vpop.f32.mrf.mxu0
    %v198 = vpop.f32.mrf.mxu0
    %v199 = vadd.f32 0.0, %v198
    %v200 = vpop.f32.mrf.mxu0
    %201 = vmatprep.mubr.bf16.mxu0 0
    %202 = vmatmul.mubr.bf16.gmra.mxu0 %v112
    %v203 = vpop.f32.mrf.mxu0
    %v204 = vadd.f32 0.0, %v203
    %v205 = vpop.f32.mrf.mxu0
    %v206 = vpop.f32.mrf.mxu0
    %v207 = vadd.f32 0.0, %v206
    %v208 = vpop.f32.mrf.mxu0
    %209 = vmatprep.mubr.bf16.mxu0 0
    %210 = vmatmul.mubr.bf16.gmra.mxu0 %v115
    %v211 = vpop.f32.mrf.mxu0
    %v212 = vadd.f32 0.0, %v211
    %v213 = vpop.f32.mrf.mxu0
    %v214 = vpop.f32.mrf.mxu0
    %v215 = vadd.f32 0.0, %v214
    %v216 = vpop.f32.mrf.mxu0
    %217 = vdwg.mxu0
    %v218 = vpack.c.bf16 %v159, %v156
    %v219 = vpack.c.bf16 %v167, %v164
    %v220 = vpack.c.bf16 %v175, %v172
    %v221 = vpack.c.bf16 %v183, %v180
    %v222 = vpack.c.bf16 %v191, %v188
    %v223 = vpack.c.bf16 %v199, %v196
    %v224 = vpack.c.bf16 %v207, %v204
    %v225 = vpack.c.bf16 %v215, %v212
    %v234 = vunpack.c.l.b16 %v218
    %v235 = vunpack.c.h.b16 %v218
    %v236 = vunpack.c.l.b16 %v219
    %v237 = vunpack.c.h.b16 %v219
    %v238 = vunpack.c.l.b16 %v220
    %v239 = vunpack.c.h.b16 %v220
    %v240 = vunpack.c.l.b16 %v221
    %v241 = vunpack.c.h.b16 %v221
    %v242 = vunpack.c.l.b16 %v222
    %v243 = vunpack.c.h.b16 %v222
    %v244 = vunpack.c.l.b16 %v223
    %v245 = vunpack.c.h.b16 %v223
    %v246 = vunpack.c.l.b16 %v224
    %v247 = vunpack.c.h.b16 %v224
    %v248 = vunpack.c.l.b16 %v225
    %v249 = vunpack.c.h.b16 %v225
    %v250 = vpack.c.b16 %v234, %v234
    %v251 = vpack.c.b16 %v235, %v235
    %v252 = vpack.c.b16 %v236, %v236
    %v253 = vpack.c.b16 %v237, %v237
    %v254 = vpack.c.b16 %v238, %v238
    %v255 = vpack.c.b16 %v239, %v239
    %v256 = vpack.c.b16 %v240, %v240
    %v257 = vpack.c.b16 %v241, %v241
    %v258 = vpack.c.b16 %v242, %v242
    %v259 = vpack.c.b16 %v243, %v243
    %v260 = vpack.c.b16 %v244, %v244
    %v261 = vpack.c.b16 %v245, %v245
    %v262 = vpack.c.b16 %v246, %v246
    %v263 = vpack.c.b16 %v247, %v247
    %v264 = vpack.c.b16 %v248, %v248
    %v265 = vpack.c.b16 %v249, %v249
    %282 = vst [vmem:[#allocation2] sm:$0xf] %v250
    %283 = vst [vmem:[#allocation2 + $0x4] sm:$0xf] %v251
    %284 = vst [vmem:[#allocation2 + $0x8] sm:$0xf] %v252
    %285 = vst [vmem:[#allocation2 + $0xc] sm:$0xf] %v253
    %286 = vst [vmem:[#allocation2 + $0x10] sm:$0xf] %v254
    %287 = vst [vmem:[#allocation2 + $0x14] sm:$0xf] %v255
    %288 = vst [vmem:[#allocation2 + $0x18] sm:$0xf] %v256
    %289 = vst [vmem:[#allocation2 + $0x1c] sm:$0xf] %v257
    %290 = vst [vmem:[#allocation2 + $0x20] sm:$0xf] %v258
    %291 = vst [vmem:[#allocation2 + $0x24] sm:$0xf] %v259
    %292 = vst [vmem:[#allocation2 + $0x28] sm:$0xf] %v260
    %293 = vst [vmem:[#allocation2 + $0x2c] sm:$0xf] %v261
    %294 = vst [vmem:[#allocation2 + $0x30] sm:$0xf] %v262
    %295 = vst [vmem:[#allocation2 + $0x34] sm:$0xf] %v263
    %296 = vst [vmem:[#allocation2 + $0x38] sm:$0xf] %v264
    %297 = vst [vmem:[#allocation2 + $0x3c] sm:$0xf] %v265
    %v298 = vadd.f32 %v156, %v159
    %v299 = vadd.f32 %v298, %v164
    %v300 = vadd.f32 %v299, %v167
    %v301 = vadd.f32 %v300, %v172
    %v302 = vadd.f32 %v301, %v175
    %v303 = vadd.f32 %v302, %v180
    %v304 = vadd.f32 %v303, %v183
    %v305 = vadd.f32 %v304, %v188
    %v306 = vadd.f32 %v305, %v191
    %v307 = vadd.f32 %v306, %v196
    %v308 = vadd.f32 %v307, %v199
    %v309 = vadd.f32 %v308, %v204
    %v310 = vadd.f32 %v309, %v207
    %v311 = vadd.f32 %v310, %v212
    %v312 = vadd.f32 %v311, %v215
    %v313 = vrot.slane %v312, 4
    %v314 = vadd.f32 %v312, %v313
    %v315 = vrot.slane %v314, 2
    %v316 = vadd.f32 %v314, %v315
    %v317 = vrot.slane %v316, 1
    %v318 = vadd.f32 %v316, %v317
    %v319 = vmul.f32 %v156, %v156
    %v320 = vmul.f32 %v159, %v159
    %v321 = vmul.f32 %v164, %v164
    %v322 = vmul.f32 %v167, %v167
    %v323 = vmul.f32 %v172, %v172
    %v324 = vmul.f32 %v175, %v175
    %v325 = vmul.f32 %v180, %v180
    %v326 = vmul.f32 %v183, %v183
    %v327 = vmul.f32 %v188, %v188
    %v328 = vmul.f32 %v191, %v191
    %v329 = vmul.f32 %v196, %v196
    %v330 = vmul.f32 %v199, %v199
    %v331 = vmul.f32 %v204, %v204
    %v332 = vmul.f32 %v207, %v207
    %v333 = vmul.f32 %v212, %v212
    %v334 = vmul.f32 %v215, %v215
    %v335 = vadd.f32 %v319, %v320
    %v336 = vadd.f32 %v335, %v321
    %v337 = vadd.f32 %v336, %v322
    %v338 = vadd.f32 %v337, %v323
    %v339 = vadd.f32 %v338, %v324
    %v340 = vadd.f32 %v339, %v325
    %v341 = vadd.f32 %v340, %v326
    %v342 = vadd.f32 %v341, %v327
    %v343 = vadd.f32 %v342, %v328
    %v344 = vadd.f32 %v343, %v329
    %v345 = vadd.f32 %v344, %v330
    %v346 = vadd.f32 %v345, %v331
    %v347 = vadd.f32 %v346, %v332
    %v348 = vadd.f32 %v347, %v333
    %v349 = vadd.f32 %v348, %v334
    %v350 = vrot.slane %v349, 4
    %v351 = vadd.f32 %v349, %v350
    %v352 = vrot.slane %v351, 2
    %v353 = vadd.f32 %v351, %v352
    %v354 = vrot.slane %v353, 1
    %v355 = vadd.f32 %v353, %v354
    %vm356 = vcmask 1040384
    %v357 = vsel %vm356, %v318, %v355
    %v358 = vsel %vm117, %v357, 0.0
    %359 = vst [vmem:[#allocation4] sm:$0xff] %v358
    // Predicated region
    $region10: #{tpu_custom_call.1} parent=1 // pred_check
      _
    $region11: #{tpu_custom_call.1} parent=1 // pred_check_branch
      %361 = sbr.rel (0) target = $region13
    $region12: #{tpu_custom_call.1} parent=1 // pred_region
      %s363 = ssub.s32 1024, 1024
      %364 = vsyncadd [#allocation3], %s363
      %s365 = sshll.u32 [#allocation2], 4
      %s366 = int_to_ptr.vmem [resolvable:$true] %s365
      %371 = dma.vmem_to_hbm [thread:$0]  %s366, 1024, %s2, [#allocation3], 64, 64, 4
    $region13: #{tpu_custom_call.1} parent=1 // pred_fallthru
      _
    // Predicated region
    $region14: #{tpu_custom_call.1} parent=1 // pred_check
      _
    $region15: #{tpu_custom_call.1} parent=1 // pred_check_branch
      %373 = sbr.rel (0) target = $region17
    $region16: #{tpu_custom_call.1} parent=1 // pred_region
      %s375 = ssub.s32 128, 128
      %376 = vsyncadd [#allocation5], %s375
      %s378 = sshll.u32 [#allocation4], 4
      %s379 = int_to_ptr.vmem [resolvable:$true] %s378
      %381 = dma.vmem_to_hbm [thread:$0]  %s379, 128, %s3, [#allocation5]
    $region17: #{tpu_custom_call.1} parent=1 // pred_fallthru
      _
    // Predicated region
    $region18: #{tpu_custom_call.1} parent=1 // pred_check
      _
    $region19: #{tpu_custom_call.1} parent=1 // pred_check_branch
      %383 = sbr.rel (0) target = $region21
    $region20: #{tpu_custom_call.1} parent=1 // pred_region
      %384 = dma.done [#allocation3], 1024
    $region21: #{tpu_custom_call.1} parent=1 // pred_fallthru
      _
    // Predicated region
    $region22: #{tpu_custom_call.1} parent=1 // pred_check
      _
    $region23: #{tpu_custom_call.1} parent=1 // pred_check_branch
      %386 = sbr.rel (0) target = $region25
    $region24: #{tpu_custom_call.1} parent=1 // pred_region
      %387 = dma.done [#allocation5], 128
    $region25: #{tpu_custom_call.1} parent=1 // pred_fallthru
      _
    %388 = vsyncpa [#allocation3], 1
    %389 = vsyncpa [#allocation5], 1

</llo_original>
